<compile_context>
chip_gen: v5e
topology: v5e:2x2
jax: 0.10.0
libtpu: 0.0.40
codegen_flags: <defaults>
</compile_context>

<pallas_src>
import functools

import jax
import jax.numpy as jnp
from jax.experimental import pallas as pl
from jax.experimental.pallas import tpu as pltpu


def _round_up(x: int, m: int) -> int:
    return ((x + m - 1) // m) * m


def _pad_lane_dim(d: int) -> int:
    """128-lane padding (v5e MXU / low waste); 256 (full v6e/v7x pass) if nearly free."""
    p128 = _round_up(d, 128)
    p256 = _round_up(d, 256)
    if d >= 512 and (p256 - d) * 16 <= d:
        return p256
    return p128


# ---------------------------------------------------------------------------
# Fused path: conv matmul + BN stats + affine + ReLU in ONE pallas_call.
# grid = (phase, tile).  Phase 0: matmul each row tile into a VMEM scratch and
# accumulate per-channel sum / sum-of-squares.  Phase 1: finalize the BN affine
# once, then apply affine+ReLU per tile straight out of VMEM.
# ---------------------------------------------------------------------------
def _fused_conv_bn_relu_kernel(p_ref, w_ref, gb_ref, o_ref,
                               conv_buf, stats_ref, affine_ref,
                               *, inv_rows: float, eps: float):
    phase = pl.program_id(0)
    i = pl.program_id(1)

    @pl.when(jnp.logical_and(phase == 0, i == 0))
    def _init_stats():
        stats_ref[...] = jnp.zeros_like(stats_ref)

    @pl.when(phase == 0)
    def _conv_and_stats():
        acc = jnp.dot(p_ref[...], w_ref[...], preferred_element_type=jnp.float32)
        conv_buf[i] = acc                                     # VMEM-resident tile
        stats_ref[0:1, :] += jnp.sum(acc, axis=0, keepdims=True)
        stats_ref[1:2, :] += jnp.sum(acc * acc, axis=0, keepdims=True)

    @pl.when(jnp.logical_and(phase == 1, i == 0))
    def _finalize_affine():
        mean = stats_ref[0:1, :] * inv_rows
        # TODO(synk): E[x^2]-E[x]^2 in f32 can cancel when |mean| >> std; a
        # shifted/Welford formulation would be safer for very large row counts.
        var = jnp.maximum(stats_ref[1:2, :] * inv_rows - mean * mean, 0.0)
        inv_std = jax.lax.rsqrt(var + eps)
        gamma = gb_ref[0:1, :]
        beta = gb_ref[1:2, :]
        affine_ref[0:1, :] = gamma * inv_std
        affine_ref[1:2, :] = beta - mean * gamma * inv_std

    @pl.when(phase == 1)
    def _affine_relu():
        y = conv_buf[i] * affine_ref[0:1, :] + affine_ref[1:2, :]
        o_ref[...] = jnp.maximum(y, 0.0).astype(o_ref.dtype)


# ---------------------------------------------------------------------------
# Two-pass fallback for layers whose conv intermediate does not fit VMEM.
# ---------------------------------------------------------------------------
def _conv_stats_kernel(p_ref, w_ref, conv_ref, stats_ref):
    """Row tile: matmul (bf16 in, f32 acc), bf16 intermediate store, BN partials."""
    acc = jnp.dot(p_ref[...], w_ref[...], preferred_element_type=jnp.float32)
    conv_ref[...] = acc.astype(conv_ref.dtype)                # bf16 intermediate
    ssum = jnp.sum(acc, axis=0, keepdims=True)
    ssq = jnp.sum(acc * acc, axis=0, keepdims=True)
    stats_ref[0, 0:1, :] = ssum                               # direct row stores
    stats_ref[0, 1:2, :] = ssq


def _bn_relu_kernel(conv_ref, scale_ref, shift_ref, o_ref):
    """Row tile: y = ReLU(conv * scale + shift) with precomputed affine."""
    y = conv_ref[...].astype(jnp.float32) * scale_ref[...] + shift_ref[...]
    o_ref[...] = jnp.maximum(y, 0.0).astype(o_ref.dtype)


def mobilenetv3_block(x_nchw, w_oihw, gamma, beta, *, stride: int = 1,
                      eps: float = 1e-5, tile_rows: int = 512,
                      fused_vmem_budget: int = 20 * 1024 * 1024):
    """PyTorch-compatible entry point: NCHW in, NCHW out (groups=1, bias=False)."""
    n, cin, h, w_in = x_nchw.shape
    cout, cin_g, kh, kw = w_oihw.shape
    assert kh == kw, "padding = kernel_size // 2 assumes a square kernel"
    # TODO(synk): groups > 1 (depthwise conv) not implemented in this kernel.
    assert cin_g == cin, "only groups=1 supported in this kernel"
    pad = kh // 2
    ho = (h + 2 * pad - kh) // stride + 1
    wo = (w_in + 2 * pad - kw) // stride + 1
    rows = n * ho * wo
    out_dtype = x_nchw.dtype
    out_isz = jnp.dtype(out_dtype).itemsize

    # ---- plain-XLA glue: layout, zero-pad, patch extraction, bf16 cast ------
    x_nhwc = jnp.transpose(x_nchw, (0, 2, 3, 1))
    if kh == 1 and kw == 1:
        # 1x1 fast path: no im2col materialisation at all.
        patches = x_nhwc[:, ::stride, ::stride, :].reshape(rows, cin)
        k_dim = cin
    else:
        # TODO(synk): this still materialises KH*KW x the input volume in HBM;
        # an in-kernel tap reduction (halo DMA per row tile) would cut it to ~1x.
        xp = jnp.pad(x_nhwc, ((0, 0), (pad, pad), (pad, pad), (0, 0)))
        taps = []
        for i in range(kh):
            for j in range(kw):
                taps.append(xp[:, i:i + (ho - 1) * stride + 1:stride,
                               j:j + (wo - 1) * stride + 1:stride, :])
        k_dim = kh * kw * cin
        patches = jnp.concatenate(taps, axis=-1).reshape(rows, k_dim)

    k_p = _pad_lane_dim(k_dim)
    # NOTE: for cout << 128 (early/squeeze layers) most of cout_p is zero padding;
    # this path is only efficient for cout >= 128 (lane-packing is a TODO).
    cout_p = _pad_lane_dim(cout)

    # ---- tile-size selection (multiples of 256 rows) -------------------------
    tile_rows = max(256, (int(tile_rows) // 256) * 256)
    # prefer >= 2 row tiles so the "parallel" row axis can split across v7x cores
    while tile_rows > 256 and rows <= tile_rows:
        tile_rows = max(256, (tile_rows // 2 // 256) * 256)

    def _pass1_bytes(tr):
        return (2 * tr * k_p * 2            # bf16 patch tile, double-buffered
                + 2 * k_p * cout_p * 2      # bf16 weight (conservatively x2)
                + 2 * tr * cout_p * 2       # bf16 conv intermediate tile
                + 2 * 2 * cout_p * 4)       # per-tile stats

    while tile_rows > 256 and _pass1_bytes(tile_rows) > (40 << 20):
        tile_rows = max(256, (tile_rows // 2 // 256) * 256)

    rows_p = _round_up(rows, tile_rows)
    num_tiles = rows_p // tile_rows

    patches_p = jnp.zeros((rows_p, k_p), jnp.bfloat16).at[:rows, :k_dim].set(
        patches.astype(jnp.bfloat16))
    w_2d = jnp.transpose(w_oihw, (2, 3, 1, 0)).reshape(k_dim, cout)
    w_p = jnp.zeros((k_p, cout_p), jnp.bfloat16).at[:k_dim, :cout].set(
        w_2d.astype(jnp.bfloat16))
    gamma_p = jnp.zeros((cout_p,), jnp.float32).at[:cout].set(
        gamma.astype(jnp.float32))
    beta_p = jnp.zeros((cout_p,), jnp.float32).at[:cout].set(
        beta.astype(jnp.float32))

    def _cparams(footprint_bytes, semantics):
        # v7x has 64 MiB VMEM per TensorCore: keep the scoped limit <= 56 MiB for
        # portability, but never below what this call actually needs.
        limit = min(56 << 20, max(32 << 20, int(footprint_bytes) + (16 << 20)))
        return pltpu.CompilerParams(dimension_semantics=semantics,
                                    vmem_limit_bytes=limit)

    conv_flops = 2 * rows_p * k_p * cout_p

    fused_bytes = (num_tiles * tile_rows * cout_p * 4        # conv_buf scratch
                   + 2 * tile_rows * k_p * 2                 # patch tile dbuf
                   + 2 * k_p * cout_p * 2                    # weight
                   + 2 * tile_rows * cout_p * out_isz        # output tile dbuf
                   + 4 * 2 * cout_p * 4)                     # gb/stats/affine

    if fused_bytes <= fused_vmem_budget:
        # ---- fused single-launch path: conv intermediate stays in VMEM ------
        gb = jnp.stack([gamma_p, beta_p], axis=0)            # (2, cout_p) f32
        kern = functools.partial(_fused_conv_bn_relu_kernel,
                                 inv_rows=float(1.0 / rows), eps=float(eps))
        cost = pl.CostEstimate(
            flops=conv_flops + 8 * rows_p * cout_p,
            transcendentals=cout_p,
            bytes_accessed=(rows_p * k_p * 2 + k_p * cout_p * 2
                            + rows_p * cout_p * out_isz + 2 * cout_p * 4))
        out_p = pl.pallas_call(
            kern,
            out_shape=jax.ShapeDtypeStruct((rows_p, cout_p), out_dtype),
            grid=(2, num_tiles),
            in_specs=[
                # phase 1 keeps the last phase-0 block index -> no re-fetch
                pl.BlockSpec((tile_rows, k_p),
                             lambda p, i: ((1 - p) * i + p * (num_tiles - 1), 0)),
                pl.BlockSpec((k_p, cout_p), lambda p, i: (0, 0)),
                pl.BlockSpec((2, cout_p), lambda p, i: (0, 0)),
            ],
            # output blocks only advance during phase 1 (each written exactly once)
            out_specs=pl.BlockSpec((tile_rows, cout_p), lambda p, i: (p * i, 0)),
            scratch_shapes=[
                pltpu.VMEM((num_tiles, tile_rows, cout_p), jnp.float32),
                pltpu.VMEM((2, cout_p), jnp.float32),
                pltpu.VMEM((2, cout_p), jnp.float32),
            ],
            compiler_params=_cparams(fused_bytes, ("arbitrary", "arbitrary")),
            cost_estimate=cost,
        )(patches_p, w_p, gb)
    else:
        # ---- two-pass fallback: bf16 conv intermediate through HBM ----------
        cost1 = pl.CostEstimate(
            flops=conv_flops, transcendentals=0,
            bytes_accessed=(rows_p * k_p * 2 + k_p * cout_p * 2
                            + rows_p * cout_p * 2 + num_tiles * 2 * cout_p * 4))
        conv_bf16, stats = pl.pallas_call(
            _conv_stats_kernel,
            out_shape=(jax.ShapeDtypeStruct((rows_p, cout_p), jnp.bfloat16),
                       jax.ShapeDtypeStruct((num_tiles, 2, cout_p), jnp.float32)),
            grid=(num_tiles,),
            in_specs=[pl.BlockSpec((tile_rows, k_p), lambda i: (i, 0)),
                      pl.BlockSpec((k_p, cout_p), lambda i: (0, 0))],
            out_specs=(pl.BlockSpec((tile_rows, cout_p), lambda i: (i, 0)),
                       pl.BlockSpec((1, 2, cout_p), lambda i: (i, 0, 0))),
            compiler_params=_cparams(_pass1_bytes(tile_rows), ("parallel",)),
            cost_estimate=cost1,
        )(patches_p, w_p)

        # tiny per-channel BN finalize (plain JAX): scale/shift affine
        tot = stats.sum(axis=0)                               # (2, cout_p)
        inv_m = jnp.float32(1.0 / rows)                       # true row count
        mean = tot[0] * inv_m
        var = jnp.maximum(tot[1] * inv_m - mean * mean, 0.0)  # biased variance
        inv_std = jax.lax.rsqrt(var + eps)
        scale = (gamma_p * inv_std).reshape(1, cout_p)
        shift = (beta_p - mean * gamma_p * inv_std).reshape(1, cout_p)

        pass2_bytes = (2 * tile_rows * cout_p * 2 + 2 * 2 * cout_p * 4
                       + 2 * tile_rows * cout_p * out_isz)
        cost2 = pl.CostEstimate(
            flops=3 * rows_p * cout_p, transcendentals=0,
            bytes_accessed=rows_p * cout_p * (2 + out_isz) + 2 * cout_p * 4)
        out_p = pl.pallas_call(
            _bn_relu_kernel,
            out_shape=jax.ShapeDtypeStruct((rows_p, cout_p), out_dtype),
            grid=(num_tiles,),
            in_specs=[pl.BlockSpec((tile_rows, cout_p), lambda i: (i, 0)),
                      pl.BlockSpec((1, cout_p), lambda i: (0, 0)),
                      pl.BlockSpec((1, cout_p), lambda i: (0, 0))],
            out_specs=pl.BlockSpec((tile_rows, cout_p), lambda i: (i, 0)),
            compiler_params=_cparams(pass2_bytes, ("parallel",)),
            cost_estimate=cost2,
        )(conv_bf16, scale, shift)

    out = out_p[:rows, :cout].reshape(n, ho, wo, cout)
    return jnp.transpose(out, (0, 3, 1, 2))                   # back to NCHW


if __name__ == "__main__":
    # MobileNetV3Block(in_channels=4, out_channels=8, kernel_size=3, stride=1)
    N, CIN, H, W = 2, 4, 16, 16
    COUT, K, STRIDE = 8, 3, 1

    key = jax.random.PRNGKey(0)
    kx, kw3, kw1 = jax.random.split(key, 3)
    x = jax.random.normal(kx, (N, CIN, H, W), dtype=jnp.float32)
    w3 = jax.random.normal(kw3, (COUT, CIN, K, K), dtype=jnp.float32) / jnp.sqrt(
        jnp.float32(CIN * K * K))
    w1 = jax.random.normal(kw1, (COUT, CIN, 1, 1), dtype=jnp.float32) / jnp.sqrt(
        jnp.float32(CIN))
    gamma = jnp.ones((COUT,), jnp.float32)    # BN weight init (ones)
    beta = jnp.zeros((COUT,), jnp.float32)    # BN bias init (zeros)

    def reference(x, w, gamma, beta, stride, k):
        conv = jax.lax.conv_general_dilated(
            x, w, window_strides=(stride, stride),
            padding=[(k // 2, k // 2), (k // 2, k // 2)],
            dimension_numbers=("NCHW", "OIHW", "NCHW"))
        m = conv.mean(axis=(0, 2, 3), keepdims=True)
        v = conv.var(axis=(0, 2, 3), keepdims=True)
        g = gamma.reshape(1, -1, 1, 1)
        b = beta.reshape(1, -1, 1, 1)
        return jnp.maximum((conv - m) * jax.lax.rsqrt(v + 1e-5) * g + b, 0.0)

    # 3x3, stride 1 -> fused single-launch path (intermediate stays in VMEM)
    out = jax.block_until_ready(mobilenetv3_block(x, w3, gamma, beta, stride=STRIDE))
    ref = reference(x, w3, gamma, beta, STRIDE, K)
    assert out.shape == (N, COUT, H // STRIDE, W // STRIDE)
    assert bool(jnp.all(out >= 0.0))          # ReLU post-condition
    err = float(jnp.max(jnp.abs(out - ref)))
    assert err < 5e-2, f"fused path: max abs error {err}"

    # force the two-pass fallback (bf16 HBM intermediate) and validate it too
    out2 = jax.block_until_ready(
        mobilenetv3_block(x, w3, gamma, beta, stride=STRIDE, fused_vmem_budget=0))
    err2 = float(jnp.max(jnp.abs(out2 - ref)))
    assert err2 < 5e-2, f"two-pass path: max abs error {err2}"

    # 1x1 conv, stride 2 -> no-im2col fast path
    out3 = jax.block_until_ready(mobilenetv3_block(x, w1, gamma, beta, stride=2))
    ref3 = reference(x, w1, gamma, beta, 2, 1)
    assert out3.shape == ref3.shape
    err3 = float(jnp.max(jnp.abs(out3 - ref3)))
    assert err3 < 5e-2, f"1x1 path: max abs error {err3}"

    print("KERNEL_OK")
</pallas_src>

<mosaic_0001>
module attributes {stable_mosaic.version = 11 : i64} {
  func.func @_fused_conv_bn_relu_kernel(%arg0: i32, %arg1: i32, %arg2: memref<256x128xbf16, #tpu.memory_space<vmem>>, %arg3: memref<128x128xbf16, #tpu.memory_space<vmem>>, %arg4: memref<2x128xf32, #tpu.memory_space<vmem>>, %arg5: memref<256x128xf32, #tpu.memory_space<vmem>>, %arg6: memref<2x256x128xf32, #tpu.memory_space<vmem>>, %arg7: memref<2x128xf32, #tpu.memory_space<vmem>>, %arg8: memref<2x128xf32, #tpu.memory_space<vmem>>) attributes {dimension_semantics = [#tpu.dimension_semantics<arbitrary>, #tpu.dimension_semantics<arbitrary>], iteration_bounds = array<i64: 2, 2>, scalar_prefetch = 0 : i64, scratch_operands = 3 : i64, tpu.core_type = #tpu.core_type<tc>, window_params = [{transform_indices = @transform_0, window_bounds = array<i64: 256, 128>}, {pipeline_mode = #tpu.pipeline_mode<synchronous>, transform_indices = @transform_1, window_bounds = array<i64: 128, 128>}, {pipeline_mode = #tpu.pipeline_mode<synchronous>, transform_indices = @transform_2, window_bounds = array<i64: 2, 128>}, {transform_indices = @transform_3, window_bounds = array<i64: 256, 128>}]} {
    %c0_i32 = arith.constant 0 : i32
    %0 = arith.cmpi eq, %arg0, %c0_i32 : i32
    %c0_i32_0 = arith.constant 0 : i32
    %1 = arith.cmpi eq, %arg1, %c0_i32_0 : i32
    %2 = arith.andi %0, %1 : i1
    %3 = arith.extui %2 : i1 to i32
    %c0_i32_1 = arith.constant 0 : i32
    %4 = arith.cmpi ne, %3, %c0_i32_1 : i32
    scf.if %4 {
      %cst = arith.constant 0.000000e+00 : f32
      %16 = vector.broadcast %cst : f32 to vector<2x128xf32>
      %c0 = arith.constant 0 : index
      %c0_8 = arith.constant 0 : index
      %17 = vector.load %arg7[%c0, %c0_8] : memref<2x128xf32, #tpu.memory_space<vmem>>, vector<2x128xf32>
      tpu.vector_store %arg7[%c0, %c0_8], %16 {strides = array<i32>} : memref<2x128xf32, #tpu.memory_space<vmem>>, vector<2x128xf32>,
    } else {
    }
    %c0_i32_2 = arith.constant 0 : i32
    %5 = arith.cmpi eq, %arg0, %c0_i32_2 : i32
    %6 = arith.extui %5 : i1 to i32
    %c0_i32_3 = arith.constant 0 : i32
    %7 = arith.cmpi ne, %6, %c0_i32_3 : i32
    scf.if %7 {
      %c0 = arith.constant 0 : index
      %c0_8 = arith.constant 0 : index
      %16 = vector.load %arg2[%c0, %c0_8] : memref<256x128xbf16, #tpu.memory_space<vmem>>, vector<256x128xbf16>
      %c0_9 = arith.constant 0 : index
      %c0_10 = arith.constant 0 : index
      %17 = vector.load %arg3[%c0_9, %c0_10] : memref<128x128xbf16, #tpu.memory_space<vmem>>, vector<128x128xbf16>
      %cst = arith.constant dense<0.000000e+00> : vector<256x128xf32>
      %18 = tpu.matmul %16, %17, %cst {dimension_numbers = #tpu.dot_dimension_numbers<[1], [0], [0], [1], [0, 0, 1, 1], [], []>} : vector<256x128xbf16>, vector<128x128xbf16>, vector<256x128xf32> -> vector<256x128xf32>
      %19 = arith.index_cast %arg1 : i32 to index
      %c0_11 = arith.constant 0 : index
      %c0_12 = arith.constant 0 : index
      %20 = vector.load %arg6[%19, %c0_11, %c0_12] : memref<2x256x128xf32, #tpu.memory_space<vmem>>, vector<1x256x128xf32>
      %21 = vector.shape_cast %20 : vector<1x256x128xf32> to vector<256x128xf32>
      %22 = vector.shape_cast %18 : vector<256x128xf32> to vector<1x256x128xf32>
      tpu.vector_store %arg6[%19, %c0_11, %c0_12], %22 {strides = array<i32>} : memref<2x256x128xf32, #tpu.memory_space<vmem>>, vector<1x256x128xf32>,
      %c0_13 = arith.constant 0 : index
      %c0_14 = arith.constant 0 : index
      %23 = vector.load %arg7[%c0_13, %c0_14] : memref<2x128xf32, #tpu.memory_space<vmem>>, vector<1x128xf32>
      %cst_15 = arith.constant dense<0.000000e+00> : vector<128xf32>
      %24 = vector.multi_reduction <add>, %18, %cst_15 [0] : vector<256x128xf32> to vector<128xf32>
      %25 = vector.shape_cast %24 : vector<128xf32> to vector<1x128xf32>
      %26 = arith.addf %23, %25 : vector<1x128xf32>
      %c0_16 = arith.constant 0 : index
      %c0_17 = arith.constant 0 : index
      %27 = vector.load %arg7[%c0_16, %c0_17] : memref<2x128xf32, #tpu.memory_space<vmem>>, vector<1x128xf32>
      tpu.vector_store %arg7[%c0_16, %c0_17], %26 {strides = array<i32>} : memref<2x128xf32, #tpu.memory_space<vmem>>, vector<1x128xf32>,
      %c1 = arith.constant 1 : index
      %c0_18 = arith.constant 0 : index
      %28 = vector.load %arg7[%c1, %c0_18] : memref<2x128xf32, #tpu.memory_space<vmem>>, vector<1x128xf32>
      %29 = arith.mulf %18, %18 : vector<256x128xf32>
      %cst_19 = arith.constant dense<0.000000e+00> : vector<128xf32>
      %30 = vector.multi_reduction <add>, %29, %cst_19 [0] : vector<256x128xf32> to vector<128xf32>
      %31 = vector.shape_cast %30 : vector<128xf32> to vector<1x128xf32>
      %32 = arith.addf %28, %31 : vector<1x128xf32>
      %c1_20 = arith.constant 1 : index
      %c0_21 = arith.constant 0 : index
      %33 = vector.load %arg7[%c1_20, %c0_21] : memref<2x128xf32, #tpu.memory_space<vmem>>, vector<1x128xf32>
      tpu.vector_store %arg7[%c1_20, %c0_21], %32 {strides = array<i32>} : memref<2x128xf32, #tpu.memory_space<vmem>>, vector<1x128xf32>,
    } else {
    }
    %c1_i32 = arith.constant 1 : i32
    %8 = arith.cmpi eq, %arg0, %c1_i32 : i32
    %c0_i32_4 = arith.constant 0 : i32
    %9 = arith.cmpi eq, %arg1, %c0_i32_4 : i32
    %10 = arith.andi %8, %9 : i1
    %11 = arith.extui %10 : i1 to i32
    %c0_i32_5 = arith.constant 0 : i32
    %12 = arith.cmpi ne, %11, %c0_i32_5 : i32
    scf.if %12 {
      %c0 = arith.constant 0 : index
      %c0_8 = arith.constant 0 : index
      %16 = vector.load %arg7[%c0, %c0_8] : memref<2x128xf32, #tpu.memory_space<vmem>>, vector<1x128xf32>
      %cst = arith.constant 0.001953125 : f32
      %17 = vector.broadcast %cst : f32 to vector<1x128xf32>
      %18 = arith.mulf %16, %17 : vector<1x128xf32>
      %c1 = arith.constant 1 : index
      %c0_9 = arith.constant 0 : index
      %19 = vector.load %arg7[%c1, %c0_9] : memref<2x128xf32, #tpu.memory_space<vmem>>, vector<1x128xf32>
      %cst_10 = arith.constant 0.001953125 : f32
      %20 = vector.broadcast %cst_10 : f32 to vector<1x128xf32>
      %21 = arith.mulf %19, %20 : vector<1x128xf32>
      %22 = arith.mulf %18, %18 : vector<1x128xf32>
      %23 = arith.subf %21, %22 : vector<1x128xf32>
      %cst_11 = arith.constant 0.000000e+00 : f32
      %24 = vector.broadcast %cst_11 : f32 to vector<1x128xf32>
      %25 = arith.maximumf %23, %24 : vector<1x128xf32>
      %cst_12 = arith.constant 9.99999974E-6 : f32
      %26 = vector.broadcast %cst_12 : f32 to vector<1x128xf32>
      %27 = arith.addf %25, %26 : vector<1x128xf32>
      %28 = math.rsqrt %27 : vector<1x128xf32>
      %c0_13 = arith.constant 0 : index
      %c0_14 = arith.constant 0 : index
      %29 = vector.load %arg4[%c0_13, %c0_14] : memref<2x128xf32, #tpu.memory_space<vmem>>, vector<1x128xf32>
      %c1_15 = arith.constant 1 : index
      %c0_16 = arith.constant 0 : index
      %30 = vector.load %arg4[%c1_15, %c0_16] : memref<2x128xf32, #tpu.memory_space<vmem>>, vector<1x128xf32>
      %31 = arith.mulf %29, %28 : vector<1x128xf32>
      %c0_17 = arith.constant 0 : index
      %c0_18 = arith.constant 0 : index
      %32 = vector.load %arg8[%c0_17, %c0_18] : memref<2x128xf32, #tpu.memory_space<vmem>>, vector<1x128xf32>
      tpu.vector_store %arg8[%c0_17, %c0_18], %31 {strides = array<i32>} : memref<2x128xf32, #tpu.memory_space<vmem>>, vector<1x128xf32>,
      %33 = arith.mulf %18, %29 : vector<1x128xf32>
      %34 = arith.mulf %33, %28 : vector<1x128xf32>
      %35 = arith.subf %30, %34 : vector<1x128xf32>
      %c1_19 = arith.constant 1 : index
      %c0_20 = arith.constant 0 : index
      %36 = vector.load %arg8[%c1_19, %c0_20] : memref<2x128xf32, #tpu.memory_space<vmem>>, vector<1x128xf32>
      tpu.vector_store %arg8[%c1_19, %c0_20], %35 {strides = array<i32>} : memref<2x128xf32, #tpu.memory_space<vmem>>, vector<1x128xf32>,
    } else {
    }
    %c1_i32_6 = arith.constant 1 : i32
    %13 = arith.cmpi eq, %arg0, %c1_i32_6 : i32
    %14 = arith.extui %13 : i1 to i32
    %c0_i32_7 = arith.constant 0 : i32
    %15 = arith.cmpi ne, %14, %c0_i32_7 : i32
    scf.if %15 {
      %16 = arith.index_cast %arg1 : i32 to index
      %c0 = arith.constant 0 : index
      %c0_8 = arith.constant 0 : index
      %17 = vector.load %arg6[%16, %c0, %c0_8] : memref<2x256x128xf32, #tpu.memory_space<vmem>>, vector<1x256x128xf32>
      %18 = vector.shape_cast %17 : vector<1x256x128xf32> to vector<256x128xf32>
      %c0_9 = arith.constant 0 : index
      %c0_10 = arith.constant 0 : index
      %19 = vector.load %arg8[%c0_9, %c0_10] : memref<2x128xf32, #tpu.memory_space<vmem>>, vector<1x128xf32>
      %20 = vector.broadcast %19 : vector<1x128xf32> to vector<256x128xf32>
      %21 = arith.mulf %18, %20 : vector<256x128xf32>
      %c1 = arith.constant 1 : index
      %c0_11 = arith.constant 0 : index
      %22 = vector.load %arg8[%c1, %c0_11] : memref<2x128xf32, #tpu.memory_space<vmem>>, vector<1x128xf32>
      %23 = vector.broadcast %22 : vector<1x128xf32> to vector<256x128xf32>
      %24 = arith.addf %21, %23 : vector<256x128xf32>
      %cst = arith.constant 0.000000e+00 : f32
      %25 = vector.broadcast %cst : f32 to vector<256x128xf32>
      %26 = arith.maximumf %24, %25 : vector<256x128xf32>
      %c0_12 = arith.constant 0 : index
      %c0_13 = arith.constant 0 : index
      %27 = vector.load %arg5[%c0_12, %c0_13] : memref<256x128xf32, #tpu.memory_space<vmem>>, vector<256x128xf32>
      tpu.vector_store %arg5[%c0_12, %c0_13], %26 {strides = array<i32>} : memref<256x128xf32, #tpu.memory_space<vmem>>, vector<256x128xf32>,
    } else {
    }
    return
  }
  func.func @transform_0(%arg0: i32, %arg1: i32) -> (i32, i32) {
    %c1_i32 = arith.constant 1 : i32
    %0 = arith.subi %c1_i32, %arg0 : i32
    %1 = arith.muli %0, %arg1 : i32
    %c1_i32_0 = arith.constant 1 : i32
    %2 = arith.muli %arg0, %c1_i32_0 : i32
    %3 = arith.addi %1, %2 : i32
    %c0_i32 = arith.constant 0 : i32
    %c0_i32_1 = arith.constant 0 : i32
    return %3, %c0_i32 : i32, i32
  }
  func.func @transform_1(%arg0: i32, %arg1: i32) -> (i32, i32) {
    %c0_i32 = arith.constant 0 : i32
    %c0_i32_0 = arith.constant 0 : i32
    %c0_i32_1 = arith.constant 0 : i32
    return %c0_i32, %c0_i32_0 : i32, i32
  }
  func.func @transform_2(%arg0: i32, %arg1: i32) -> (i32, i32) {
    %c0_i32 = arith.constant 0 : i32
    %c0_i32_0 = arith.constant 0 : i32
    %c0_i32_1 = arith.constant 0 : i32
    return %c0_i32, %c0_i32_0 : i32, i32
  }
  func.func @transform_3(%arg0: i32, %arg1: i32) -> (i32, i32) {
    %0 = arith.muli %arg0, %arg1 : i32
    %c0_i32 = arith.constant 0 : i32
    %c0_i32_0 = arith.constant 0 : i32
    return %0, %c0_i32 : i32, i32
  }
}

</mosaic_0001>

<llo_original>
// kernel: tpu_custom_call.1
$region0: #{tpu_custom_call.1}
  #allocation0 [shape = 'u32[]', space=smem, size = 0x4, offset = 0x4, fixed_abs, tag = 'smem constant byte address 0x4 - core index']
  #allocation1 [shape = 'u32[72,128]{1,0:T(1,128)}', space=vmem, size = 0x9000, scoped, tag = 'internal scratch']
  #allocation2 [shape = 'f32[2,256,128]{2,1,0:T(8,128)}', space=vmem, size = 0x40000, scoped, tag = 'scratch operand']
  #allocation3 [shape = 'f32[2,128]{1,0:T(2,128)}', space=vmem, size = 0x400, scoped, tag = 'scratch operand']
  #allocation4 [shape = 'f32[2,128]{1,0:T(2,128)}', space=vmem, size = 0x400, scoped, tag = 'scratch operand']
  %s0 = inlined_call_operand.hbm [shape: bf16[512,128], index: 0, kind: input, shape index: {}]
  %s1 = inlined_call_operand.hbm [shape: bf16[128,128], index: 1, kind: input, shape index: {}]
  %s2 = inlined_call_operand.hbm [shape: f32[2,128], index: 2, kind: input, shape index: {}]
  %s3 = inlined_call_operand.hbm [shape: f32[512,128], index: 3, kind: output, shape index: {}]
  %s4 = sld [smem:[#allocation0]]
  $region73: #{tpu_custom_call.1} parent=0
    _
  %s6 = ssub.s32 1, %s4
  %s7 = scalar_select 0, %s6, %s4
  $region1: #{tpu_custom_call.1} parent=0
    #allocation5 [shape = 'u8[131072]{0}', space=vmem, size = 0x20000, scoped, tag = 'input window, operand 0']
    #allocation6 [shape = 's32[2]{0}', space=sflag, size = 0x8, scoped, tag = 'scoped memory for tpu_custom_call.1']
    #allocation7 [shape = 's32[2]{0}', space=sflag, size = 0x8, scoped, tag = 'scoped memory for tpu_custom_call.1']
    #allocation8 [shape = 'u8[32768]{0}', space=vmem, size = 0x8000, scoped, tag = 'input window, operand 1, single buffered']
    #allocation9 [shape = 's32[1]{0}', space=sflag, size = 0x4, scoped, tag = 'scoped memory for tpu_custom_call.1']
    #allocation10 [shape = 'u8[1024]{0}', space=vmem, size = 0x400, scoped, tag = 'input window, operand 2, single buffered']
    #allocation11 [shape = 'u8[262144]{0}', space=vmem, size = 0x40000, scoped, tag = 'output window, operand 0']
    %8 = vsyncpa [#allocation6], 0
    %s9 = scalar_lea.sflag [#allocation6], 1
    %10 = vsyncpa %s9, 0
    %11 = vsyncpa [#allocation9], 0
    %12 = vsyncpa [#allocation7], 0
    %s13 = scalar_lea.sflag [#allocation7], 1
    %14 = vsyncpa %s13, 0
    loop: start=0, step=1, limit=6
    $region2: #{tpu_custom_call.1} parent=1 // loop_pre_header
      _
    $region3: #{tpu_custom_call.1} parent=1 // loop_header
      %s16 = sphi 0, %s20
      %p17 = scmp.ge.s32.totalorder %s16, 6
      %s23 = sphi 0, %s35
      %s24 = sphi 0, %s31
      %s25 = sphi 0, %s23
      %s26 = sphi 0, %s24
      %s27 = sphi 0, %s25
      %s28 = sphi 0, %s26
      %s44 = sphi 0, %s46
      %s47 = sphi 0, %s44
      %s48 = sphi 0, %s47
      %s64 = sphi 0, %s48
      %s68 = sphi 0, %s68
      %s70 = sphi 0, %s68
      %s71 = sphi 0, %s70
      %s85 = sphi 0, %s71
      %s89 = sphi 0, %s89
      %s91 = sphi 0, %s89
      %s92 = sphi 0, %s91
      %s106 = sphi 0, %s92
      %s114 = sphi 0, %s116
      %s117 = sphi 0, %s114
      %s118 = sphi 0, %s117
      %s134 = sphi 0, %s118
    $region4: #{tpu_custom_call.1} parent=1 // loop_header_branch
      %19 = sbr.rel (%p17) target = $region8
    $region5: #{tpu_custom_call.1} parent=1 // loop_body
      %s21 = ssub.s32 %s16, 1
      %s22 = ssub.s32 %s16, 2
      %s29 = sadd.s32 1, %s24
      %p30 = scmp.ge.s32.totalorder %s29, 2
      %s31 = scalar_select %p30, 0, %s29
      %s32 = sadd.s32 1, %s23
      %s33 = scalar_select %p30, %s32, %s23
      %p34 = scmp.ge.s32.totalorder %s33, 2
      %s35 = scalar_select %p34, 0, %s33
      %s36 = ssub.s32 1, %s23
      %s37 = smul.u32 %s36, %s24
      %s38 = sadd.s32 %s37, %s23
      %s39 = ssub.s32 1, %s35
      %s40 = smul.u32 %s39, %s31
      %s41 = sadd.s32 %s40, %s35
      %s42 = ssub.s32 %s38, %s41
      %p43 = scmp.eq.s32.totalorder %s42, 0
      %s45 = sadd.s32 %s44, 1
      %s46 = scalar_select %p43, %s44, %s45
      %p49 = pneg %p43
      %p50 = scmp.eq.s32.totalorder %s16, 3
      %p51 = por %p49, %p50
      %p52 = scmp.ne.s32.totalorder %s44, %s47
      %p53 = scmp.eq.s32.totalorder %s16, 0
      %p54 = por %p52, %p53
      %p55 = scmp.ne.s32.totalorder %s44, %s47
      %p56 = scmp.eq.s32.totalorder %s21, 3
      %p57 = por %p55, %p56
      %p58 = scmp.ne.s32.totalorder %s47, %s48
      %p59 = scmp.eq.s32.totalorder %s21, 0
      %p60 = por %p58, %p59
      %p61 = scmp.ne.s32.totalorder %s47, %s48
      %p62 = scmp.eq.s32.totalorder %s22, 3
      %p63 = por %p61, %p62
      %p65 = scmp.ne.s32.totalorder %s48, %s64
      %p66 = scmp.eq.s32.totalorder %s22, 0
      %p67 = por %p65, %p66
      %s69 = sadd.s32 %s68, 1
      %p72 = scmp.eq.s32.totalorder %s16, 3
      %p73 = scmp.ne.s32.totalorder %s68, %s70
      %p74 = scmp.eq.s32.totalorder %s16, 0
      %p75 = por %p73, %p74
      %p76 = scmp.ne.s32.totalorder %s68, %s70
      %p77 = scmp.eq.s32.totalorder %s21, 3
      %p78 = por %p76, %p77
      %p79 = scmp.ne.s32.totalorder %s70, %s71
      %p80 = scmp.eq.s32.totalorder %s21, 0
      %p81 = por %p79, %p80
      %p82 = scmp.ne.s32.totalorder %s70, %s71
      %p83 = scmp.eq.s32.totalorder %s22, 3
      %p84 = por %p82, %p83
      %p86 = scmp.ne.s32.totalorder %s71, %s85
      %p87 = scmp.eq.s32.totalorder %s22, 0
      %p88 = por %p86, %p87
      %s90 = sadd.s32 %s89, 1
      %p93 = scmp.eq.s32.totalorder %s16, 3
      %p94 = scmp.ne.s32.totalorder %s89, %s91
      %p95 = scmp.eq.s32.totalorder %s16, 0
      %p96 = por %p94, %p95
      %p97 = scmp.ne.s32.totalorder %s89, %s91
      %p98 = scmp.eq.s32.totalorder %s21, 3
      %p99 = por %p97, %p98
      %p100 = scmp.ne.s32.totalorder %s91, %s92
      %p101 = scmp.eq.s32.totalorder %s21, 0
      %p102 = por %p100, %p101
      %p103 = scmp.ne.s32.totalorder %s91, %s92
      %p104 = scmp.eq.s32.totalorder %s22, 3
      %p105 = por %p103, %p104
      %p107 = scmp.ne.s32.totalorder %s92, %s106
      %p108 = scmp.eq.s32.totalorder %s22, 0
      %p109 = por %p107, %p108
      %s110 = smul.u32 %s23, %s24
      %s111 = smul.u32 %s35, %s31
      %s112 = ssub.s32 %s110, %s111
      %p113 = scmp.eq.s32.totalorder %s112, 0
      %s115 = sadd.s32 %s114, 1
      %s116 = scalar_select %p113, %s114, %s115
      %p119 = pneg %p113
      %p120 = scmp.eq.s32.totalorder %s16, 3
      %p121 = por %p119, %p120
      %p122 = scmp.ne.s32.totalorder %s114, %s117
      %p123 = scmp.eq.s32.totalorder %s16, 0
      %p124 = por %p122, %p123
      %p125 = scmp.ne.s32.totalorder %s114, %s117
      %p126 = scmp.eq.s32.totalorder %s21, 3
      %p127 = por %p125, %p126
      %p128 = scmp.ne.s32.totalorder %s117, %s118
      %p129 = scmp.eq.s32.totalorder %s21, 0
      %p130 = por %p128, %p129
      %p131 = scmp.ne.s32.totalorder %s117, %s118
      %p132 = scmp.eq.s32.totalorder %s22, 3
      %p133 = por %p131, %p132
      %p135 = scmp.ne.s32.totalorder %s118, %s134
      %p136 = scmp.eq.s32.totalorder %s22, 0
      %p137 = por %p135, %p136
      %p138 = scmp.le.s32.totalorder 1, %s16
      %p139 = scmp.lt.s32.totalorder %s16, 5
      %p140 = pnand %p138, %p139
      %p141 = pneg %p140
      // Predicated region
      $region9: #{tpu_custom_call.1} parent=5 // pred_check
        _
      $region10: #{tpu_custom_call.1} parent=5 // pred_check_branch
        %143 = sbr.rel (%p140) target = $region12
      $region11: #{tpu_custom_call.1} parent=5 // pred_region
        %s144 = ssub.s32 %s16, 1
        // Predicated region
        $region13: #{tpu_custom_call.1} parent=11 // pred_check
          %p145 = pneg %p81
        $region14: #{tpu_custom_call.1} parent=11 // pred_check_branch
          %147 = sbr.rel (%p145) target = $region16
        $region15: #{tpu_custom_call.1} parent=11 // pred_region
          %149 = vsyncadd [#allocation9], 0
          %s150 = sshll.u32 %s1, 4
          %s151 = int_to_ptr.hbm [resolvable:$true] %s150
          %s152 = sshll.u32 [#allocation8], 4
          %s153 = int_to_ptr.vmem [resolvable:$true] %s152
          %158 = dma.hbm_to_vmem [thread:$0]  %s151, 1024, %s153, [#allocation9], 64, 64, 4
        $region16: #{tpu_custom_call.1} parent=11 // pred_fallthru
          _
        // Predicated region
        $region17: #{tpu_custom_call.1} parent=11 // pred_check
          %p159 = pneg %p102
        $region18: #{tpu_custom_call.1} parent=11 // pred_check_branch
          %161 = sbr.rel (%p159) target = $region20
        $region19: #{tpu_custom_call.1} parent=11 // pred_region
          %163 = vsyncadd [#allocation9], 0
          %s165 = sshll.u32 %s2, 4
          %s166 = int_to_ptr.hbm [resolvable:$true] %s165
          %s167 = sshll.u32 [#allocation10], 4
          %s168 = int_to_ptr.vmem [resolvable:$true] %s167
          %170 = dma.hbm_to_vmem [thread:$0]  %s166, 32, %s168, [#allocation9]
        $region20: #{tpu_custom_call.1} parent=11 // pred_fallthru
          _
      $region12: #{tpu_custom_call.1} parent=5 // pred_fallthru
        _
      %p171 = scmp.lt.s32.totalorder %s16, 4
      // Predicated region
      $region21: #{tpu_custom_call.1} parent=5 // pred_check
        %p172 = pneg %p171
      $region22: #{tpu_custom_call.1} parent=5 // pred_check_branch
        %174 = sbr.rel (%p172) target = $region24
      $region23: #{tpu_custom_call.1} parent=5 // pred_region
        // Predicated region
        $region25: #{tpu_custom_call.1} parent=23 // pred_check
          %p175 = pneg %p54
        $region26: #{tpu_custom_call.1} parent=23 // pred_check_branch
          %177 = sbr.rel (%p175) target = $region28
        $region27: #{tpu_custom_call.1} parent=23 // pred_region
          %s178 = sand.u32 %s44, 1
          %s179 = scalar_lea.sflag [#allocation6], %s178
          %s180 = sand.u32 %s44, 1
          %s181 = smul.addr %s180, 128
          %s182 = scalar_lea.vmem [#allocation5], %s181
          %s183 = ssub.s32 1, %s23
          %s184 = smul.u32 %s183, %s24
          %s185 = sadd.s32 %s184, %s23
          %s186 = smul.u32 32, %s185
          %188 = vsyncadd %s179, 0
          %s189 = smul.addr %s186, 4
          %s190 = scalar_lea.hbm %s0, %s189
          %s191 = sshll.u32 %s190, 4
          %s192 = int_to_ptr.hbm [resolvable:$true] %s191
          %s193 = sshll.u32 %s182, 4
          %s194 = int_to_ptr.vmem [resolvable:$true] %s193
          %199 = dma.hbm_to_vmem [thread:$0]  %s192, 2048, %s194, %s179, 64, 64, 4
        $region28: #{tpu_custom_call.1} parent=23 // pred_fallthru
          _
      $region24: #{tpu_custom_call.1} parent=5 // pred_fallthru
        _
      %p200 = scmp.le.s32.totalorder 1, %s16
      %p201 = scmp.lt.s32.totalorder %s16, 5
      %p202 = pnand %p200, %p201
      %p203 = pneg %p202
      // Predicated region
      $region29: #{tpu_custom_call.1} parent=5 // pred_check
        _
      $region30: #{tpu_custom_call.1} parent=5 // pred_check_branch
        %205 = sbr.rel (%p202) target = $region32
      $region31: #{tpu_custom_call.1} parent=5 // pred_region
        %s206 = ssub.s32 %s16, 1
        %s207 = sand.u32 %s47, 1
        %s208 = scalar_lea.sflag [#allocation6], %s207
        %s209 = sand.u32 %s47, 1
        %s210 = smul.addr %s209, 128
        %s211 = scalar_lea.vmem [#allocation5], %s210
        // Predicated region
        $region33: #{tpu_custom_call.1} parent=31 // pred_check
          %p212 = pneg %p60
        $region34: #{tpu_custom_call.1} parent=31 // pred_check_branch
          %214 = sbr.rel (%p212) target = $region36
        $region35: #{tpu_custom_call.1} parent=31 // pred_region
          %216 = dma.done %s208, 2048
        $region36: #{tpu_custom_call.1} parent=31 // pred_fallthru
          _
        // Predicated region
        $region37: #{tpu_custom_call.1} parent=31 // pred_check
          %p217 = pneg %p81
        $region38: #{tpu_custom_call.1} parent=31 // pred_check_branch
          %219 = sbr.rel (%p217) target = $region40
        $region39: #{tpu_custom_call.1} parent=31 // pred_region
          %221 = dma.done [#allocation9], 1024
        $region40: #{tpu_custom_call.1} parent=31 // pred_fallthru
          _
        // Predicated region
        $region41: #{tpu_custom_call.1} parent=31 // pred_check
          %p222 = pneg %p102
        $region42: #{tpu_custom_call.1} parent=31 // pred_check_branch
          %224 = sbr.rel (%p222) target = $region44
        $region43: #{tpu_custom_call.1} parent=31 // pred_region
          %226 = dma.done [#allocation9], 32
        $region44: #{tpu_custom_call.1} parent=31 // pred_fallthru
          _
        %s227 = sand.u32 %s47, 1
        %s228 = scalar_lea.sflag [#allocation6], %s227
        %s229 = sand.u32 %s47, 1
        %s230 = smul.addr %s229, 128
        %s231 = scalar_lea.vmem [#allocation5], %s230
        %p232 = pneg %p60
        %p233 = pneg %p57
        %p234 = pneg %p81
        %p235 = pneg %p78
        %p236 = pneg %p102
        %p237 = pneg %p99
        %p238 = pneg %p130
        %p239 = pneg %p127
        %s240 = sand.u32 %s117, 1
        %s241 = scalar_lea.sflag [#allocation7], %s240
        %s242 = sand.u32 %s117, 1
        %s243 = smul.addr %s242, 256
        %s244 = scalar_lea.vmem [#allocation11], %s243
        %s245 = ssub.s32 1, %s25
        %s246 = smul.u32 %s245, %s26
        %s247 = sadd.s32 %s246, %s25
        %s248 = smul.u32 32, %s247
        %s249 = smul.u32 %s25, %s26
        %s250 = smul.u32 32, %s249
        %p251 = scmp.eq.s32.totalorder %s25, 0
        %p252 = scmp.eq.s32.totalorder %s26, 0
        %p253 = pnand %p251, %p252
        %p254 = pneg %p253
        // Predicated region
        $region45: #{tpu_custom_call.1} parent=31 // pred_check
          _
        $region46: #{tpu_custom_call.1} parent=31 // pred_check_branch
          %256 = sbr.rel (%p253) target = $region48
        $region47: #{tpu_custom_call.1} parent=31 // pred_region
          %257 = vst [vmem:[#allocation3] sm:$0x3] 0.0
        $region48: #{tpu_custom_call.1} parent=31 // pred_fallthru
          _
        // Predicated region
        $region49: #{tpu_custom_call.1} parent=31 // pred_check
          %p258 = pneg %p251
        $region50: #{tpu_custom_call.1} parent=31 // pred_check_branch
          %260 = sbr.rel (%p258) target = $region52
        $region51: #{tpu_custom_call.1} parent=31 // pred_region
          %v261 = vld [vmem:[%s211] sm:$0xf]
          %v262 = vld [vmem:[%s211 + $0x4] sm:$0xf]
          %v263 = vld [vmem:[%s211 + $0x8] sm:$0xf]
          %v264 = vld [vmem:[%s211 + $0xc] sm:$0xf]
          %v265 = vld [vmem:[%s211 + $0x10] sm:$0xf]
          %v266 = vld [vmem:[%s211 + $0x14] sm:$0xf]
          %v267 = vld [vmem:[%s211 + $0x18] sm:$0xf]
          %v268 = vld [vmem:[%s211 + $0x1c] sm:$0xf]
          %v269 = vld [vmem:[%s211 + $0x20] sm:$0xf]
          %v270 = vld [vmem:[%s211 + $0x24] sm:$0xf]
          %v271 = vld [vmem:[%s211 + $0x28] sm:$0xf]
          %v272 = vld [vmem:[%s211 + $0x2c] sm:$0xf]
          %v273 = vld [vmem:[%s211 + $0x30] sm:$0xf]
          %v274 = vld [vmem:[%s211 + $0x34] sm:$0xf]
          %v275 = vld [vmem:[%s211 + $0x38] sm:$0xf]
          %v276 = vld [vmem:[%s211 + $0x3c] sm:$0xf]
          %v277 = vld [vmem:[%s211 + $0x40] sm:$0xf]
          %v278 = vld [vmem:[%s211 + $0x44] sm:$0xf]
          %v279 = vld [vmem:[%s211 + $0x48] sm:$0xf]
          %v280 = vld [vmem:[%s211 + $0x4c] sm:$0xf]
          %v281 = vld [vmem:[%s211 + $0x50] sm:$0xf]
          %v282 = vld [vmem:[%s211 + $0x54] sm:$0xf]
          %v283 = vld [vmem:[%s211 + $0x58] sm:$0xf]
          %v284 = vld [vmem:[%s211 + $0x5c] sm:$0xf]
          %v285 = vld [vmem:[%s211 + $0x60] sm:$0xf]
          %v286 = vld [vmem:[%s211 + $0x64] sm:$0xf]
          %v287 = vld [vmem:[%s211 + $0x68] sm:$0xf]
          %v288 = vld [vmem:[%s211 + $0x6c] sm:$0xf]
          %v289 = vld [vmem:[%s211 + $0x70] sm:$0xf]
          %v290 = vld [vmem:[%s211 + $0x74] sm:$0xf]
          %v291 = vld [vmem:[%s211 + $0x78] sm:$0xf]
          %v292 = vld [vmem:[%s211 + $0x7c] sm:$0xf]
          %v293 = vld [vmem:[#allocation8] sm:$0xf]
          %v294 = vld [vmem:[#allocation8 + $0x4] sm:$0xf]
          %v295 = vld [vmem:[#allocation8 + $0x8] sm:$0xf]
          %v296 = vld [vmem:[#allocation8 + $0xc] sm:$0xf]
          %v297 = vld [vmem:[#allocation8 + $0x10] sm:$0xf]
          %v298 = vld [vmem:[#allocation8 + $0x14] sm:$0xf]
          %v299 = vld [vmem:[#allocation8 + $0x18] sm:$0xf]
          %v300 = vld [vmem:[#allocation8 + $0x1c] sm:$0xf]
          %v301 = vld [vmem:[#allocation8 + $0x20] sm:$0xf]
          %v302 = vld [vmem:[#allocation8 + $0x24] sm:$0xf]
          %v303 = vld [vmem:[#allocation8 + $0x28] sm:$0xf]
          %v304 = vld [vmem:[#allocation8 + $0x2c] sm:$0xf]
          %v305 = vld [vmem:[#allocation8 + $0x30] sm:$0xf]
          %v306 = vld [vmem:[#allocation8 + $0x34] sm:$0xf]
          %v307 = vld [vmem:[#allocation8 + $0x38] sm:$0xf]
          %v308 = vld [vmem:[#allocation8 + $0x3c] sm:$0xf]
          %v341 = vunpack.c.l.b16 %v261
          %v342 = vunpack.c.l.b16 %v262
          %v343 = vunpack.c.l.b16 %v263
          %v344 = vunpack.c.l.b16 %v264
          %v345 = vunpack.c.l.b16 %v265
          %v346 = vunpack.c.l.b16 %v266
          %v347 = vunpack.c.l.b16 %v267
          %v348 = vunpack.c.l.b16 %v268
          %v349 = vunpack.c.l.b16 %v269
          %v350 = vunpack.c.l.b16 %v270
          %v351 = vunpack.c.l.b16 %v271
          %v352 = vunpack.c.l.b16 %v272
          %v353 = vunpack.c.l.b16 %v273
          %v354 = vunpack.c.l.b16 %v274
          %v355 = vunpack.c.l.b16 %v275
          %v356 = vunpack.c.l.b16 %v276
          %v357 = vunpack.c.l.b16 %v277
          %v358 = vunpack.c.l.b16 %v278
          %v359 = vunpack.c.l.b16 %v279
          %v360 = vunpack.c.l.b16 %v280
          %v361 = vunpack.c.l.b16 %v281
          %v362 = vunpack.c.l.b16 %v282
          %v363 = vunpack.c.l.b16 %v283
          %v364 = vunpack.c.l.b16 %v284
          %v365 = vunpack.c.l.b16 %v285
          %v366 = vunpack.c.l.b16 %v286
          %v367 = vunpack.c.l.b16 %v287
          %v368 = vunpack.c.l.b16 %v288
          %v369 = vunpack.c.l.b16 %v289
          %v370 = vunpack.c.l.b16 %v290
          %v371 = vunpack.c.l.b16 %v291
          %v372 = vunpack.c.l.b16 %v292
          %v373 = vpack.c.b16 %v342, %v341
          %v374 = vpack.c.b16 %v344, %v343
          %v375 = vpack.c.b16 %v346, %v345
          %v376 = vpack.c.b16 %v348, %v347
          %v377 = vpack.c.b16 %v350, %v349
          %v378 = vpack.c.b16 %v352, %v351
          %v379 = vpack.c.b16 %v354, %v353
          %v380 = vpack.c.b16 %v356, %v355
          %v381 = vpack.c.b16 %v358, %v357
          %v382 = vpack.c.b16 %v360, %v359
          %v383 = vpack.c.b16 %v362, %v361
          %v384 = vpack.c.b16 %v364, %v363
          %v385 = vpack.c.b16 %v366, %v365
          %v386 = vpack.c.b16 %v368, %v367
          %v387 = vpack.c.b16 %v370, %v369
          %v388 = vpack.c.b16 %v372, %v371
          %v421 = vunpack.c.l.b16 %v293
          %v422 = vunpack.c.l.b16 %v294
          %v423 = vunpack.c.l.b16 %v295
          %v424 = vunpack.c.l.b16 %v296
          %v425 = vunpack.c.l.b16 %v297
          %v426 = vunpack.c.l.b16 %v298
          %v427 = vunpack.c.l.b16 %v299
          %v428 = vunpack.c.l.b16 %v300
          %v429 = vunpack.c.l.b16 %v301
          %v430 = vunpack.c.l.b16 %v302
          %v431 = vunpack.c.l.b16 %v303
          %v432 = vunpack.c.l.b16 %v304
          %v433 = vunpack.c.l.b16 %v305
          %v434 = vunpack.c.l.b16 %v306
          %v435 = vunpack.c.l.b16 %v307
          %v436 = vunpack.c.l.b16 %v308
          %v437 = vpack.c.b16 %v422, %v421
          %v438 = vpack.c.b16 %v424, %v423
          %v439 = vpack.c.b16 %v426, %v425
          %v440 = vpack.c.b16 %v428, %v427
          %v441 = vpack.c.b16 %v430, %v429
          %v442 = vpack.c.b16 %v432, %v431
          %v443 = vpack.c.b16 %v434, %v433
          %v444 = vpack.c.b16 %v436, %v435
          %453 = vmatpush.bf16.msra.mxu0 %v444
          %454 = vmatpush.bf16.msra.mxu0 %v443
          %455 = vmatpush.bf16.msra.mxu0 %v442
          %456 = vmatpush.bf16.msra.mxu0 %v441
          %457 = vmatpush.bf16.msra.mxu0 %v440
          %458 = vmatpush.bf16.msra.mxu0 %v439
          %459 = vmatpush.bf16.msra.mxu0 %v438
          %460 = vmatpush.bf16.msra.mxu0 %v437
          %461 = vmatmul.bf16.gmra.mxu0 %v373
          %v462 = vpop.f32.mrf.mxu0
          %v463 = vadd.f32 0.0, %v462
          %v464 = vpop.f32.mrf.mxu0
          %v465 = vadd.f32 0.0, %v464
          %466 = vmatmul.bf16.gmra.mxu0 %v374
          %v467 = vpop.f32.mrf.mxu0
          %v468 = vadd.f32 0.0, %v467
          %v469 = vpop.f32.mrf.mxu0
          %v470 = vadd.f32 0.0, %v469
          %471 = vmatmul.bf16.gmra.mxu0 %v375
          %v472 = vpop.f32.mrf.mxu0
          %v473 = vadd.f32 0.0, %v472
          %v474 = vpop.f32.mrf.mxu0
          %v475 = vadd.f32 0.0, %v474
          %476 = vmatmul.bf16.gmra.mxu0 %v376
          %v477 = vpop.f32.mrf.mxu0
          %v478 = vadd.f32 0.0, %v477
          %v479 = vpop.f32.mrf.mxu0
          %v480 = vadd.f32 0.0, %v479
          %481 = vmatmul.bf16.gmra.mxu0 %v377
          %v482 = vpop.f32.mrf.mxu0
          %v483 = vadd.f32 0.0, %v482
          %v484 = vpop.f32.mrf.mxu0
          %v485 = vadd.f32 0.0, %v484
          %486 = vmatmul.bf16.gmra.mxu0 %v378
          %v487 = vpop.f32.mrf.mxu0
          %v488 = vadd.f32 0.0, %v487
          %v489 = vpop.f32.mrf.mxu0
          %v490 = vadd.f32 0.0, %v489
          %491 = vmatmul.bf16.gmra.mxu0 %v379
          %v492 = vpop.f32.mrf.mxu0
          %v493 = vadd.f32 0.0, %v492
          %v494 = vpop.f32.mrf.mxu0
          %v495 = vadd.f32 0.0, %v494
          %496 = vmatmul.bf16.gmra.mxu0 %v380
          %v497 = vpop.f32.mrf.mxu0
          %v498 = vadd.f32 0.0, %v497
          %v499 = vpop.f32.mrf.mxu0
          %v500 = vadd.f32 0.0, %v499
          %501 = vmatmul.bf16.gmra.mxu0 %v381
          %v502 = vpop.f32.mrf.mxu0
          %v503 = vadd.f32 0.0, %v502
          %v504 = vpop.f32.mrf.mxu0
          %v505 = vadd.f32 0.0, %v504
          %506 = vmatmul.bf16.gmra.mxu0 %v382
          %v507 = vpop.f32.mrf.mxu0
          %v508 = vadd.f32 0.0, %v507
          %v509 = vpop.f32.mrf.mxu0
          %v510 = vadd.f32 0.0, %v509
          %511 = vmatmul.bf16.gmra.mxu0 %v383
          %v512 = vpop.f32.mrf.mxu0
          %v513 = vadd.f32 0.0, %v512
          %v514 = vpop.f32.mrf.mxu0
          %v515 = vadd.f32 0.0, %v514
          %516 = vmatmul.bf16.gmra.mxu0 %v384
          %v517 = vpop.f32.mrf.mxu0
          %v518 = vadd.f32 0.0, %v517
          %v519 = vpop.f32.mrf.mxu0
          %v520 = vadd.f32 0.0, %v519
          %521 = vmatmul.bf16.gmra.mxu0 %v385
          %v522 = vpop.f32.mrf.mxu0
          %v523 = vadd.f32 0.0, %v522
          %v524 = vpop.f32.mrf.mxu0
          %v525 = vadd.f32 0.0, %v524
          %526 = vmatmul.bf16.gmra.mxu0 %v386
          %v527 = vpop.f32.mrf.mxu0
          %v528 = vadd.f32 0.0, %v527
          %v529 = vpop.f32.mrf.mxu0
          %v530 = vadd.f32 0.0, %v529
          %531 = vmatmul.bf16.gmra.mxu0 %v387
          %v532 = vpop.f32.mrf.mxu0
          %v533 = vadd.f32 0.0, %v532
          %v534 = vpop.f32.mrf.mxu0
          %v535 = vadd.f32 0.0, %v534
          %536 = vmatmul.bf16.gmra.mxu0 %v388
          %v537 = vpop.f32.mrf.mxu0
          %v538 = vadd.f32 0.0, %v537
          %v539 = vpop.f32.mrf.mxu0
          %v540 = vadd.f32 0.0, %v539
          %541 = vdwg.mxu0
          %s542 = smul.u32 %s26, 256
          %s543 = scalar_lea.vmem [#allocation2], %s542
          %544 = vst [vmem:[%s543] sm:$0xff] %v463
          %545 = vst [vmem:[%s543 + $0x8] sm:$0xff] %v465
          %546 = vst [vmem:[%s543 + $0x10] sm:$0xff] %v468
          %547 = vst [vmem:[%s543 + $0x18] sm:$0xff] %v470
          %548 = vst [vmem:[%s543 + $0x20] sm:$0xff] %v473
          %549 = vst [vmem:[%s543 + $0x28] sm:$0xff] %v475
          %550 = vst [vmem:[%s543 + $0x30] sm:$0xff] %v478
          %551 = vst [vmem:[%s543 + $0x38] sm:$0xff] %v480
          %552 = vst [vmem:[%s543 + $0x40] sm:$0xff] %v483
          %553 = vst [vmem:[%s543 + $0x48] sm:$0xff] %v485
          %554 = vst [vmem:[%s543 + $0x50] sm:$0xff] %v488
          %555 = vst [vmem:[%s543 + $0x58] sm:$0xff] %v490
          %556 = vst [vmem:[%s543 + $0x60] sm:$0xff] %v493
          %557 = vst [vmem:[%s543 + $0x68] sm:$0xff] %v495
          %558 = vst [vmem:[%s543 + $0x70] sm:$0xff] %v498
          %559 = vst [vmem:[%s543 + $0x78] sm:$0xff] %v500
          %560 = vst [vmem:[%s543 + $0x80] sm:$0xff] %v503
          %561 = vst [vmem:[%s543 + $0x88] sm:$0xff] %v505
          %562 = vst [vmem:[%s543 + $0x90] sm:$0xff] %v508
          %563 = vst [vmem:[%s543 + $0x98] sm:$0xff] %v510
          %564 = vst [vmem:[%s543 + $0xa0] sm:$0xff] %v513
          %565 = vst [vmem:[%s543 + $0xa8] sm:$0xff] %v515
          %566 = vst [vmem:[%s543 + $0xb0] sm:$0xff] %v518
          %567 = vst [vmem:[%s543 + $0xb8] sm:$0xff] %v520
          %568 = vst [vmem:[%s543 + $0xc0] sm:$0xff] %v523
          %569 = vst [vmem:[%s543 + $0xc8] sm:$0xff] %v525
          %570 = vst [vmem:[%s543 + $0xd0] sm:$0xff] %v528
          %571 = vst [vmem:[%s543 + $0xd8] sm:$0xff] %v530
          %572 = vst [vmem:[%s543 + $0xe0] sm:$0xff] %v533
          %573 = vst [vmem:[%s543 + $0xe8] sm:$0xff] %v535
          %574 = vst [vmem:[%s543 + $0xf0] sm:$0xff] %v538
          %575 = vst [vmem:[%s543 + $0xf8] sm:$0xff] %v540
          %v576 = vld [vmem:[#allocation3] sm:$0x1]
          %v577 = vadd.f32 %v463, %v465
          %v578 = vadd.f32 %v577, %v468
          %v579 = vadd.f32 %v578, %v470
          %v580 = vadd.f32 %v579, %v473
          %v581 = vadd.f32 %v580, %v475
          %v582 = vadd.f32 %v581, %v478
          %v583 = vadd.f32 %v582, %v480
          %v584 = vadd.f32 %v583, %v483
          %v585 = vadd.f32 %v584, %v485
          %v586 = vadd.f32 %v585, %v488
          %v587 = vadd.f32 %v586, %v490
          %v588 = vadd.f32 %v587, %v493
          %v589 = vadd.f32 %v588, %v495
          %v590 = vadd.f32 %v589, %v498
          %v591 = vadd.f32 %v590, %v500
          %v592 = vadd.f32 %v591, %v503
          %v593 = vadd.f32 %v592, %v505
          %v594 = vadd.f32 %v593, %v508
          %v595 = vadd.f32 %v594, %v510
          %v596 = vadd.f32 %v595, %v513
          %v597 = vadd.f32 %v596, %v515
          %v598 = vadd.f32 %v597, %v518
          %v599 = vadd.f32 %v598, %v520
          %v600 = vadd.f32 %v599, %v523
          %v601 = vadd.f32 %v600, %v525
          %v602 = vadd.f32 %v601, %v528
          %v603 = vadd.f32 %v602, %v530
          %v604 = vadd.f32 %v603, %v533
          %v605 = vadd.f32 %v604, %v535
          %v606 = vadd.f32 %v605, %v538
          %v607 = vadd.f32 %v606, %v540
          %v608 = vrot.slane %v607, 4
          %v609 = vadd.f32 %v607, %v608
          %v610 = vrot.slane %v609, 2
          %v611 = vadd.f32 %v609, %v610
          %v612 = vrot.slane %v611, 1
          %v613 = vadd.f32 %v611, %v612
          %v614 = vadd.f32 %v576, %v613
          %615 = vst [vmem:[#allocation3] sm:$0x1] %v614
          %v616 = vld [vmem:[#allocation3 + $0x1] sm:$0x1]
          %v617 = vmul.f32 %v463, %v463
          %v618 = vmul.f32 %v465, %v465
          %v619 = vmul.f32 %v468, %v468
          %v620 = vmul.f32 %v470, %v470
          %v621 = vmul.f32 %v473, %v473
          %v622 = vmul.f32 %v475, %v475
          %v623 = vmul.f32 %v478, %v478
          %v624 = vmul.f32 %v480, %v480
          %v625 = vmul.f32 %v483, %v483
          %v626 = vmul.f32 %v485, %v485
          %v627 = vmul.f32 %v488, %v488
          %v628 = vmul.f32 %v490, %v490
          %v629 = vmul.f32 %v493, %v493
          %v630 = vmul.f32 %v495, %v495
          %v631 = vmul.f32 %v498, %v498
          %v632 = vmul.f32 %v500, %v500
          %v633 = vmul.f32 %v503, %v503
          %v634 = vmul.f32 %v505, %v505
          %v635 = vmul.f32 %v508, %v508
          %v636 = vmul.f32 %v510, %v510
          %v637 = vmul.f32 %v513, %v513
          %v638 = vmul.f32 %v515, %v515
          %v639 = vmul.f32 %v518, %v518
          %v640 = vmul.f32 %v520, %v520
          %v641 = vmul.f32 %v523, %v523
          %v642 = vmul.f32 %v525, %v525
          %v643 = vmul.f32 %v528, %v528
          %v644 = vmul.f32 %v530, %v530
          %v645 = vmul.f32 %v533, %v533
          %v646 = vmul.f32 %v535, %v535
          %v647 = vmul.f32 %v538, %v538
          %v648 = vmul.f32 %v540, %v540
          %v649 = vadd.f32 %v617, %v618
          %v650 = vadd.f32 %v649, %v619
          %v651 = vadd.f32 %v650, %v620
          %v652 = vadd.f32 %v651, %v621
          %v653 = vadd.f32 %v652, %v622
          %v654 = vadd.f32 %v653, %v623
          %v655 = vadd.f32 %v654, %v624
          %v656 = vadd.f32 %v655, %v625
          %v657 = vadd.f32 %v656, %v626
          %v658 = vadd.f32 %v657, %v627
          %v659 = vadd.f32 %v658, %v628
          %v660 = vadd.f32 %v659, %v629
          %v661 = vadd.f32 %v660, %v630
          %v662 = vadd.f32 %v661, %v631
          %v663 = vadd.f32 %v662, %v632
          %v664 = vadd.f32 %v663, %v633
          %v665 = vadd.f32 %v664, %v634
          %v666 = vadd.f32 %v665, %v635
          %v667 = vadd.f32 %v666, %v636
          %v668 = vadd.f32 %v667, %v637
          %v669 = vadd.f32 %v668, %v638
          %v670 = vadd.f32 %v669, %v639
          %v671 = vadd.f32 %v670, %v640
          %v672 = vadd.f32 %v671, %v641
          %v673 = vadd.f32 %v672, %v642
          %v674 = vadd.f32 %v673, %v643
          %v675 = vadd.f32 %v674, %v644
          %v676 = vadd.f32 %v675, %v645
          %v677 = vadd.f32 %v676, %v646
          %v678 = vadd.f32 %v677, %v647
          %v679 = vadd.f32 %v678, %v648
          %v680 = vrot.slane %v679, 4
          %v681 = vadd.f32 %v679, %v680
          %v682 = vrot.slane %v681, 2
          %v683 = vadd.f32 %v681, %v682
          %v684 = vrot.slane %v683, 1
          %v685 = vadd.f32 %v683, %v684
          %v686 = vadd.f32 %v616, %v685
          %687 = vst [vmem:[#allocation3 + $0x1] sm:$0x1] %v686
        $region52: #{tpu_custom_call.1} parent=31 // pred_fallthru
          _
        %p688 = scmp.eq.s32.totalorder %s25, 1
        %p689 = pnand %p688, %p252
        %p690 = pneg %p689
        // Predicated region
        $region53: #{tpu_custom_call.1} parent=31 // pred_check
          _
        $region54: #{tpu_custom_call.1} parent=31 // pred_check_branch
          %692 = sbr.rel (%p689) target = $region56
        $region55: #{tpu_custom_call.1} parent=31 // pred_region
          %v693 = vld [vmem:[#allocation3] sm:$0x1]
          %v694 = vmul.f32 %v693, 0.001953125
          %v695 = vld [vmem:[#allocation3 + $0x1] sm:$0x1]
          %v696 = vmul.f32 %v695, 0.001953125
          %v697 = vmul.f32 %v694, %v694
          %v698 = vsub.f32 %v696, %v697
          %v699 = vmax.f32 %v698, 0.0
          %v700 = vadd.f32 %v699, 1e-05
          %v701 = vrsqrt.pop %v700
          %v702 = vmul.f32 %v701, %v700
          %v703 = vmul.f32 %v702, %v701
          %v704 = vmul.f32 0.5, %v703
          %v705 = vsub.f32 1.5, %v704
          %v706 = vmul.f32 %v701, %v705
          %vm707 = vweird.f32 %v700
          %vm708 = vweird.f32 %v701
          %vm709 = vmor %vm707, %vm708
          %v710 = vsel %vm709, %v701, %v706
          %v711 = vld [vmem:[#allocation10] sm:$0x1]
          %v712 = vld [vmem:[#allocation10 + $0x1] sm:$0x1]
          %v713 = vmul.f32 %v711, %v710
          %714 = vst [vmem:[#allocation4] sm:$0x1] %v713
          %v715 = vmul.f32 %v694, %v711
          %v716 = vmul.f32 %v715, %v710
          %v717 = vsub.f32 %v712, %v716
          %718 = vst [vmem:[#allocation4 + $0x1] sm:$0x1] %v717
        $region56: #{tpu_custom_call.1} parent=31 // pred_fallthru
          _
        // Predicated region
        $region57: #{tpu_custom_call.1} parent=31 // pred_check
          %p719 = pneg %p688
        $region58: #{tpu_custom_call.1} parent=31 // pred_check_branch
          %721 = sbr.rel (%p719) target = $region60
        $region59: #{tpu_custom_call.1} parent=31 // pred_region
          %s722 = smul.u32 %s26, 256
          %s723 = scalar_lea.vmem [#allocation2], %s722
          %v724 = vld [vmem:[%s723] sm:$0xff]
          %v725 = vld [vmem:[%s723 + $0x8] sm:$0xff]
          %v726 = vld [vmem:[%s723 + $0x10] sm:$0xff]
          %v727 = vld [vmem:[%s723 + $0x18] sm:$0xff]
          %v728 = vld [vmem:[%s723 + $0x20] sm:$0xff]
          %v729 = vld [vmem:[%s723 + $0x28] sm:$0xff]
          %v730 = vld [vmem:[%s723 + $0x30] sm:$0xff]
          %v731 = vld [vmem:[%s723 + $0x38] sm:$0xff]
          %v732 = vld [vmem:[%s723 + $0x40] sm:$0xff]
          %v733 = vld [vmem:[%s723 + $0x48] sm:$0xff]
          %v734 = vld [vmem:[%s723 + $0x50] sm:$0xff]
          %v735 = vld [vmem:[%s723 + $0x58] sm:$0xff]
          %v736 = vld [vmem:[%s723 + $0x60] sm:$0xff]
          %v737 = vld [vmem:[%s723 + $0x68] sm:$0xff]
          %v738 = vld [vmem:[%s723 + $0x70] sm:$0xff]
          %v739 = vld [vmem:[%s723 + $0x78] sm:$0xff]
          %v740 = vld [vmem:[%s723 + $0x80] sm:$0xff]
          %v741 = vld [vmem:[%s723 + $0x88] sm:$0xff]
          %v742 = vld [vmem:[%s723 + $0x90] sm:$0xff]
          %v743 = vld [vmem:[%s723 + $0x98] sm:$0xff]
          %v744 = vld [vmem:[%s723 + $0xa0] sm:$0xff]
          %v745 = vld [vmem:[%s723 + $0xa8] sm:$0xff]
          %v746 = vld [vmem:[%s723 + $0xb0] sm:$0xff]
          %v747 = vld [vmem:[%s723 + $0xb8] sm:$0xff]
          %v748 = vld [vmem:[%s723 + $0xc0] sm:$0xff]
          %v749 = vld [vmem:[%s723 + $0xc8] sm:$0xff]
          %v750 = vld [vmem:[%s723 + $0xd0] sm:$0xff]
          %v751 = vld [vmem:[%s723 + $0xd8] sm:$0xff]
          %v752 = vld [vmem:[%s723 + $0xe0] sm:$0xff]
          %v753 = vld [vmem:[%s723 + $0xe8] sm:$0xff]
          %v754 = vld [vmem:[%s723 + $0xf0] sm:$0xff]
          %v755 = vld [vmem:[%s723 + $0xf8] sm:$0xff]
          %v756 = vld [vmem:[#allocation4] sm:$0x1]
          %v757 = vperm.slane %v756, 0
          %v758 = vmul.f32 %v724, %v757
          %v759 = vmul.f32 %v725, %v757
          %v760 = vmul.f32 %v726, %v757
          %v761 = vmul.f32 %v727, %v757
          %v762 = vmul.f32 %v728, %v757
          %v763 = vmul.f32 %v729, %v757
          %v764 = vmul.f32 %v730, %v757
          %v765 = vmul.f32 %v731, %v757
          %v766 = vmul.f32 %v732, %v757
          %v767 = vmul.f32 %v733, %v757
          %v768 = vmul.f32 %v734, %v757
          %v769 = vmul.f32 %v735, %v757
          %v770 = vmul.f32 %v736, %v757
          %v771 = vmul.f32 %v737, %v757
          %v772 = vmul.f32 %v738, %v757
          %v773 = vmul.f32 %v739, %v757
          %v774 = vmul.f32 %v740, %v757
          %v775 = vmul.f32 %v741, %v757
          %v776 = vmul.f32 %v742, %v757
          %v777 = vmul.f32 %v743, %v757
          %v778 = vmul.f32 %v744, %v757
          %v779 = vmul.f32 %v745, %v757
          %v780 = vmul.f32 %v746, %v757
          %v781 = vmul.f32 %v747, %v757
          %v782 = vmul.f32 %v748, %v757
          %v783 = vmul.f32 %v749, %v757
          %v784 = vmul.f32 %v750, %v757
          %v785 = vmul.f32 %v751, %v757
          %v786 = vmul.f32 %v752, %v757
          %v787 = vmul.f32 %v753, %v757
          %v788 = vmul.f32 %v754, %v757
          %v789 = vmul.f32 %v755, %v757
          %v790 = vld [vmem:[#allocation4 + $0x1] sm:$0x1]
          %v791 = vperm.slane %v790, 0
          %v792 = vadd.f32 %v758, %v791
          %v793 = vadd.f32 %v759, %v791
          %v794 = vadd.f32 %v760, %v791
          %v795 = vadd.f32 %v761, %v791
          %v796 = vadd.f32 %v762, %v791
          %v797 = vadd.f32 %v763, %v791
          %v798 = vadd.f32 %v764, %v791
          %v799 = vadd.f32 %v765, %v791
          %v800 = vadd.f32 %v766, %v791
          %v801 = vadd.f32 %v767, %v791
          %v802 = vadd.f32 %v768, %v791
          %v803 = vadd.f32 %v769, %v791
          %v804 = vadd.f32 %v770, %v791
          %v805 = vadd.f32 %v771, %v791
          %v806 = vadd.f32 %v772, %v791
          %v807 = vadd.f32 %v773, %v791
          %v808 = vadd.f32 %v774, %v791
          %v809 = vadd.f32 %v775, %v791
          %v810 = vadd.f32 %v776, %v791
          %v811 = vadd.f32 %v777, %v791
          %v812 = vadd.f32 %v778, %v791
          %v813 = vadd.f32 %v779, %v791
          %v814 = vadd.f32 %v780, %v791
          %v815 = vadd.f32 %v781, %v791
          %v816 = vadd.f32 %v782, %v791
          %v817 = vadd.f32 %v783, %v791
          %v818 = vadd.f32 %v784, %v791
          %v819 = vadd.f32 %v785, %v791
          %v820 = vadd.f32 %v786, %v791
          %v821 = vadd.f32 %v787, %v791
          %v822 = vadd.f32 %v788, %v791
          %v823 = vadd.f32 %v789, %v791
          %v824 = vmax.f32 %v792, 0.0
          %v825 = vmax.f32 %v793, 0.0
          %v826 = vmax.f32 %v794, 0.0
          %v827 = vmax.f32 %v795, 0.0
          %v828 = vmax.f32 %v796, 0.0
          %v829 = vmax.f32 %v797, 0.0
          %v830 = vmax.f32 %v798, 0.0
          %v831 = vmax.f32 %v799, 0.0
          %v832 = vmax.f32 %v800, 0.0
          %v833 = vmax.f32 %v801, 0.0
          %v834 = vmax.f32 %v802, 0.0
          %v835 = vmax.f32 %v803, 0.0
          %v836 = vmax.f32 %v804, 0.0
          %v837 = vmax.f32 %v805, 0.0
          %v838 = vmax.f32 %v806, 0.0
          %v839 = vmax.f32 %v807, 0.0
          %v840 = vmax.f32 %v808, 0.0
          %v841 = vmax.f32 %v809, 0.0
          %v842 = vmax.f32 %v810, 0.0
          %v843 = vmax.f32 %v811, 0.0
          %v844 = vmax.f32 %v812, 0.0
          %v845 = vmax.f32 %v813, 0.0
          %v846 = vmax.f32 %v814, 0.0
          %v847 = vmax.f32 %v815, 0.0
          %v848 = vmax.f32 %v816, 0.0
          %v849 = vmax.f32 %v817, 0.0
          %v850 = vmax.f32 %v818, 0.0
          %v851 = vmax.f32 %v819, 0.0
          %v852 = vmax.f32 %v820, 0.0
          %v853 = vmax.f32 %v821, 0.0
          %v854 = vmax.f32 %v822, 0.0
          %v855 = vmax.f32 %v823, 0.0
          %856 = vst [vmem:[%s244] sm:$0xff] %v824
          %857 = vst [vmem:[%s244 + $0x8] sm:$0xff] %v825
          %858 = vst [vmem:[%s244 + $0x10] sm:$0xff] %v826
          %859 = vst [vmem:[%s244 + $0x18] sm:$0xff] %v827
          %860 = vst [vmem:[%s244 + $0x20] sm:$0xff] %v828
          %861 = vst [vmem:[%s244 + $0x28] sm:$0xff] %v829
          %862 = vst [vmem:[%s244 + $0x30] sm:$0xff] %v830
          %863 = vst [vmem:[%s244 + $0x38] sm:$0xff] %v831
          %864 = vst [vmem:[%s244 + $0x40] sm:$0xff] %v832
          %865 = vst [vmem:[%s244 + $0x48] sm:$0xff] %v833
          %866 = vst [vmem:[%s244 + $0x50] sm:$0xff] %v834
          %867 = vst [vmem:[%s244 + $0x58] sm:$0xff] %v835
          %868 = vst [vmem:[%s244 + $0x60] sm:$0xff] %v836
          %869 = vst [vmem:[%s244 + $0x68] sm:$0xff] %v837
          %870 = vst [vmem:[%s244 + $0x70] sm:$0xff] %v838
          %871 = vst [vmem:[%s244 + $0x78] sm:$0xff] %v839
          %872 = vst [vmem:[%s244 + $0x80] sm:$0xff] %v840
          %873 = vst [vmem:[%s244 + $0x88] sm:$0xff] %v841
          %874 = vst [vmem:[%s244 + $0x90] sm:$0xff] %v842
          %875 = vst [vmem:[%s244 + $0x98] sm:$0xff] %v843
          %876 = vst [vmem:[%s244 + $0xa0] sm:$0xff] %v844
          %877 = vst [vmem:[%s244 + $0xa8] sm:$0xff] %v845
          %878 = vst [vmem:[%s244 + $0xb0] sm:$0xff] %v846
          %879 = vst [vmem:[%s244 + $0xb8] sm:$0xff] %v847
          %880 = vst [vmem:[%s244 + $0xc0] sm:$0xff] %v848
          %881 = vst [vmem:[%s244 + $0xc8] sm:$0xff] %v849
          %882 = vst [vmem:[%s244 + $0xd0] sm:$0xff] %v850
          %883 = vst [vmem:[%s244 + $0xd8] sm:$0xff] %v851
          %884 = vst [vmem:[%s244 + $0xe0] sm:$0xff] %v852
          %885 = vst [vmem:[%s244 + $0xe8] sm:$0xff] %v853
          %886 = vst [vmem:[%s244 + $0xf0] sm:$0xff] %v854
          %887 = vst [vmem:[%s244 + $0xf8] sm:$0xff] %v855
        $region60: #{tpu_custom_call.1} parent=31 // pred_fallthru
          _
        %s888 = sand.u32 %s117, 1
        %s889 = scalar_lea.sflag [#allocation7], %s888
        %s890 = sand.u32 %s117, 1
        %s891 = smul.addr %s890, 256
        %s892 = scalar_lea.vmem [#allocation11], %s891
        // Predicated region
        $region61: #{tpu_custom_call.1} parent=31 // pred_check
          %p893 = pneg %p127
        $region62: #{tpu_custom_call.1} parent=31 // pred_check_branch
          %895 = sbr.rel (%p893) target = $region64
        $region63: #{tpu_custom_call.1} parent=31 // pred_region
          %s896 = smul.u32 %s25, %s26
          %s897 = smul.u32 32, %s896
          %899 = vsyncadd %s889, 0
          %s900 = smul.addr %s897, 8
          %s901 = scalar_lea.hbm %s3, %s900
          %s902 = sshll.u32 %s892, 4
          %s903 = int_to_ptr.vmem [resolvable:$true] %s902
          %s904 = sshll.u32 %s901, 4
          %s905 = int_to_ptr.hbm [resolvable:$true] %s904
          %910 = dma.vmem_to_hbm [thread:$0]  %s903, 4096, %s905, %s889, 128, 128, 8
        $region64: #{tpu_custom_call.1} parent=31 // pred_fallthru
          _
      $region32: #{tpu_custom_call.1} parent=5 // pred_fallthru
        _
      %p911 = scmp.le.s32.totalorder 2, %s16
      // Predicated region
      $region65: #{tpu_custom_call.1} parent=5 // pred_check
        %p912 = pneg %p911
      $region66: #{tpu_custom_call.1} parent=5 // pred_check_branch
        %914 = sbr.rel (%p912) target = $region68
      $region67: #{tpu_custom_call.1} parent=5 // pred_region
        %s915 = ssub.s32 %s16, 2
        // Predicated region
        $region69: #{tpu_custom_call.1} parent=67 // pred_check
          %p916 = pneg %p133
        $region70: #{tpu_custom_call.1} parent=67 // pred_check_branch
          %918 = sbr.rel (%p916) target = $region72
        $region71: #{tpu_custom_call.1} parent=67 // pred_region
          %s919 = sand.u32 %s118, 1
          %s920 = scalar_lea.sflag [#allocation7], %s919
          %s921 = sand.u32 %s118, 1
          %s922 = smul.addr %s921, 256
          %s923 = scalar_lea.vmem [#allocation11], %s922
          %925 = dma.done %s920, 4096
        $region72: #{tpu_custom_call.1} parent=67 // pred_fallthru
          _
      $region68: #{tpu_custom_call.1} parent=5 // pred_fallthru
        _
    $region6: #{tpu_custom_call.1} parent=1 // loop_footer
      %s20 = sadd.s32 1, %s16
    $region7: #{tpu_custom_call.1} parent=1 // loop_footer_branch
      %15 = sbr.rel target = $region3
    $region8: #{tpu_custom_call.1} parent=1 // loop_exit
      _
    %926 = vsyncpa [#allocation6], 1
    %s927 = scalar_lea.sflag [#allocation6], 1
    %928 = vsyncpa %s927, 1
    %929 = vsyncpa [#allocation9], 1
    %930 = vsyncpa [#allocation7], 1
    %s931 = scalar_lea.sflag [#allocation7], 1
    %932 = vsyncpa %s931, 1

</llo_original>
